<compile_context>
chip_gen: v7x
topology: tpu7x:2x2x1
jax: 0.10.0
libtpu: 0.0.40
codegen_flags: <defaults>
</compile_context>

<pallas_src>
import functools

import jax
import jax.numpy as jnp
from jax import lax
from jax.experimental import pallas as pl
from jax.experimental.pallas import tpu as pltpu

_MIB = 1024 * 1024
DEF_EPS = 1e-6


# ----------------------------- helpers ---------------------------------------

def _t5_rms_norm(x, w, eps):
    """T5/Switch layer norm (RMS, no mean subtraction), math in f32. w: (1, D) f32."""
    xf = x.astype(jnp.float32)
    var = jnp.mean(xf * xf, axis=-1, keepdims=True)
    return xf * lax.rsqrt(var + eps) * w


def _pick_tile(S, parallel_mult, candidates=(512, 256, 128)):
    """Largest aligned tile dividing S; keep >= 2 total 'parallel' tiles for megacore."""
    divs = [t for t in candidates if S % t == 0]
    if not divs:
        return S  # whole-axis fallback (small shapes); see TODO about padding.
    for t in divs:
        if parallel_mult * (S // t) >= 2:
            return t
    return divs[-1]


def _kv_tile(S, candidates=(256, 128)):
    for t in candidates:
        if S % t == 0:
            return t
    return S


def _vmem_limit(block_bytes, scratch_bytes):
    """Scoped-VMEM request derived from the footprint (double-buffered blocks + margin)."""
    need = int(1.3 * (2 * block_bytes + scratch_bytes))
    return max(32 * _MIB, min(need, 100 * _MIB))


def _cast(w, cdt):
    return w if w.dtype == cdt else w.astype(cdt)


# -------------------- fused LN + linear projection pre-pass -------------------

def _proj_kernel(*refs, eps, cdt, use_ln, n_w):
    # refs = (hidden, [ln_w], w_0..w_{n_w-1}, o_0..o_{n_w-1})
    h_ref = refs[0]
    off = 1
    if use_ln:
        lnw_ref = refs[1]
        off = 2
        x = _t5_rms_norm(h_ref[0], lnw_ref[...], eps)
    else:
        x = h_ref[0].astype(jnp.float32)
    x = x.astype(cdt)
    w_refs = refs[off:off + n_w]
    o_refs = refs[off + n_w:off + 2 * n_w]
    for w_ref, o_ref in zip(w_refs, o_refs):
        o_ref[0] = jnp.dot(x, w_ref[...],
                           preferred_element_type=jnp.float32).astype(o_ref.dtype)


def linear_projections(hidden, weights, ln_weight=None, *, eps=DEF_EPS,
                       compute_dtype=jnp.bfloat16, out_dtype=None):
    """out_i = (T5LayerNorm(hidden) if ln_weight is not None else hidden) @ weights[i].

    Single fused pallas_call: LN computed once, hidden read once.  Weights are
    nn.Linear.weight.T, i.e. (D, N_i).  Outputs (B, S, N_i) in out_dtype (defaults to
    compute_dtype so the attention kernel streams them directly).
    """
    B, S, D = hidden.shape
    cdt = jnp.dtype(compute_dtype)
    odt = jnp.dtype(out_dtype) if out_dtype is not None else cdt
    use_ln = ln_weight is not None
    ws = [_cast(w, cdt) for w in weights]      # no-op if params were prepared once
    n_w = len(ws)
    for w in ws:
        assert w.shape[0] == D

    ts = _pick_tile(S, B)
    n_s = S // ts

    in_specs = [pl.BlockSpec((1, ts, D), lambda b, si: (b, si, 0))]
    inputs = [hidden]
    if use_ln:
        lnw = ln_weight.astype(jnp.float32).reshape(1, D)
        in_specs.append(pl.BlockSpec((1, D), lambda b, si: (0, 0)))
        inputs.append(lnw)
    for w in ws:
        in_specs.append(pl.BlockSpec((D, w.shape[1]), lambda b, si: (0, 0)))
        inputs.append(w)

    out_specs = tuple(pl.BlockSpec((1, ts, w.shape[1]), lambda b, si: (b, si, 0))
                      for w in ws)
    out_shape = tuple(jax.ShapeDtypeStruct((B, S, w.shape[1]), odt) for w in ws)

    block_bytes = (ts * D * hidden.dtype.itemsize
                   + sum(D * w.shape[1] * cdt.itemsize for w in ws)
                   + sum(ts * w.shape[1] * odt.itemsize for w in ws))
    kernel = functools.partial(_proj_kernel, eps=eps, cdt=cdt, use_ln=use_ln, n_w=n_w)
    cost = pl.CostEstimate(
        flops=int(2 * B * S * D * sum(w.shape[1] for w in ws)),
        transcendentals=0,
        bytes_accessed=int(hidden.size * hidden.dtype.itemsize
                           + sum(w.size * cdt.itemsize for w in ws)
                           + sum(B * S * w.shape[1] * odt.itemsize for w in ws)))

    outs = pl.pallas_call(
        kernel,
        out_shape=out_shape,
        grid_spec=pltpu.PrefetchScalarGridSpec(
            num_scalar_prefetch=0, grid=(B, n_s),
            in_specs=in_specs, out_specs=out_specs),
        compiler_params=pltpu.CompilerParams(
            dimension_semantics=("parallel", "parallel"),
            vmem_limit_bytes=_vmem_limit(block_bytes, 0)),
        cost_estimate=cost,
    )(*inputs)
    return outs if isinstance(outs, (tuple, list)) else (outs,)


# ------------------ flash attention (+ output proj + residual) ----------------

def _flash_attn_kernel(hq_ref, q_ref, k_ref, v_ref, bias_ref, wo_ref, o_ref,
                       m_scr, l_scr, acc_scr,
                       *, n_heads, d_kv, cdt, approx_recip):
    ki = pl.program_id(2)
    n_kv = pl.num_programs(2)

    @pl.when(ki == 0)
    def _():
        m_scr[...] = jnp.full_like(m_scr, -jnp.inf)
        l_scr[...] = jnp.zeros_like(l_scr)
        acc_scr[...] = jnp.zeros_like(acc_scr)

    # Per-head 2-D dots on contiguous lane slices of the pre-projected Q/K/V tiles.
    for h in range(n_heads):
        sl = slice(h * d_kv, (h + 1) * d_kv)
        q_h = q_ref[0, :, sl]                                                   # (tq, d_kv)
        k_h = k_ref[0, :, sl]                                                   # (tk, d_kv)
        v_h = v_ref[0, :, sl]                                                   # (tk, d_kv)

        # scores = Q @ K^T + position_bias   (T5: no 1/sqrt(d) scaling); f32 accumulate.
        s = lax.dot_general(q_h, k_h, (((1,), (1,)), ((), ())),
                            preferred_element_type=jnp.float32)                 # (tq, tk)
        s = s + bias_ref[0, h].astype(jnp.float32)                              # bias stays f32

        # online softmax (per head, f32)
        m_prev = m_scr[h]                                                       # (tq, 1)
        m_new = jnp.maximum(m_prev, jnp.max(s, axis=-1, keepdims=True))
        alpha = jnp.exp(m_prev - m_new)
        p = jnp.exp(s - m_new)                                                  # (tq, tk)
        l_scr[h] = alpha * l_scr[h] + jnp.sum(p, axis=-1, keepdims=True)
        m_scr[h] = m_new
        pv = jnp.dot(p.astype(cdt), v_h, preferred_element_type=jnp.float32)    # (tq, d_kv)
        # TODO(synk): group 128//d_kv heads per update so this read-modify-write is a
        #             full 128-lane store instead of a masked d_kv-wide sub-slice.
        acc_scr[:, sl] = alpha * acc_scr[:, sl] + pv

    # finalize: normalize, output projection, residual add
    @pl.when(ki == n_kv - 1)
    def _():
        for h in range(n_heads):
            sl = slice(h * d_kv, (h + 1) * d_kv)
            inv_l = pl.reciprocal(l_scr[h], approx=approx_recip)                # (tq, 1)
            acc_scr[:, sl] = acc_scr[:, sl] * inv_l
        ctx = acc_scr[...].astype(cdt)                                          # (tq, inner)
        out = jnp.dot(ctx, wo_ref[...], preferred_element_type=jnp.float32)     # (tq, D)
        o_ref[0] = (hq_ref[0].astype(jnp.float32) + out).astype(o_ref.dtype)


def switch_attention_layer(hidden_q, hidden_kv, position_bias, ln_weight,
                           wq, wk, wv, wo, *, n_heads, d_kv, is_self_attention=True,
                           eps=DEF_EPS, compute_dtype=jnp.bfloat16):
    """hidden_q + SwitchAttention(T5LayerNorm(hidden_q), position_bias, K/V side).

    Weights are nn.Linear.weight.T: wq/wk/wv (D, inner), wo (inner, D).
    Self-attention: hidden_kv is hidden_q (K/V projected from the LN'd hidden).
    Cross-attention (is_self_attention=False): K/V are projected from the raw
    hidden_kv (encoder states) with NO layer norm, matching T5LayerCrossAttention.
    """
    B, Sq, D = hidden_q.shape
    _, Sk, _ = hidden_kv.shape
    inner = n_heads * d_kv
    assert wq.shape == (D, inner) and wk.shape == (D, inner)
    assert wv.shape == (D, inner) and wo.shape == (inner, D)
    assert position_bias.shape == (B, n_heads, Sq, Sk)
    assert ln_weight.shape == (D,)

    cdt = jnp.dtype(compute_dtype)
    approx_recip = bool(cdt == jnp.dtype(jnp.bfloat16))

    # ---- pre-pass: LN + Q/K/V projections computed exactly once (no per-q-tile
    #      K/V recompute inside the flash grid). ----
    if is_self_attention:
        q_p, k_p, v_p = linear_projections(hidden_q, (wq, wk, wv), ln_weight,
                                           eps=eps, compute_dtype=cdt)
    else:
        (q_p,) = linear_projections(hidden_q, (wq,), ln_weight,
                                    eps=eps, compute_dtype=cdt)
        k_p, v_p = linear_projections(hidden_kv, (wk, wv), None,
                                      eps=eps, compute_dtype=cdt)

    wo_c = _cast(wo, cdt)

    tq = _pick_tile(Sq, B)
    tk = _kv_tile(Sk)
    n_q, n_kv = Sq // tq, Sk // tk

    kernel = functools.partial(_flash_attn_kernel, n_heads=n_heads, d_kv=d_kv,
                               cdt=cdt, approx_recip=approx_recip)

    bias_isz = position_bias.dtype.itemsize
    h_isz = hidden_q.dtype.itemsize
    block_bytes = (tq * D * h_isz + tq * inner * cdt.itemsize
                   + 2 * tk * inner * cdt.itemsize
                   + n_heads * tq * tk * bias_isz
                   + inner * D * cdt.itemsize + tq * D * h_isz)
    scratch_bytes = 2 * n_heads * tq * 128 * 4 + tq * inner * 4

    cost = pl.CostEstimate(
        flops=int(2 * B * (2 * Sq * Sk * inner + Sq * inner * D)),
        transcendentals=int(B * n_heads * Sq * Sk),
        bytes_accessed=int(B * n_heads * Sq * Sk * bias_isz
                           + 2 * B * Sq * D * h_isz
                           + B * Sq * inner * cdt.itemsize
                           + 2 * n_q * B * Sk * inner * cdt.itemsize
                           + inner * D * cdt.itemsize))

    grid_spec = pltpu.PrefetchScalarGridSpec(
        num_scalar_prefetch=0,
        grid=(B, n_q, n_kv),
        in_specs=[
            pl.BlockSpec((1, tq, D), lambda b, qi, ki: (b, qi, 0)),             # residual
            pl.BlockSpec((1, tq, inner), lambda b, qi, ki: (b, qi, 0)),         # Q (pre-projected)
            pl.BlockSpec((1, tk, inner), lambda b, qi, ki: (b, ki, 0)),         # K
            pl.BlockSpec((1, tk, inner), lambda b, qi, ki: (b, ki, 0)),         # V
            pl.BlockSpec((1, n_heads, tq, tk), lambda b, qi, ki: (b, 0, qi, ki)),  # bias (f32)
            pl.BlockSpec((inner, D), lambda b, qi, ki: (0, 0)),                 # wo
        ],
        out_specs=pl.BlockSpec((1, tq, D), lambda b, qi, ki: (b, qi, 0)),
        scratch_shapes=[
            pltpu.VMEM((n_heads, tq, 1), jnp.float32),   # running max m
            pltpu.VMEM((n_heads, tq, 1), jnp.float32),   # running sum l
            pltpu.VMEM((tq, inner), jnp.float32),        # context accumulator
        ],
    )

    return pl.pallas_call(
        kernel,
        out_shape=jax.ShapeDtypeStruct((B, Sq, D), hidden_q.dtype),
        grid_spec=grid_spec,
        compiler_params=pltpu.CompilerParams(
            dimension_semantics=("parallel", "parallel", "arbitrary"),
            vmem_limit_bytes=_vmem_limit(block_bytes, scratch_bytes)),
        cost_estimate=cost,
    )(hidden_q, q_p, k_p, v_p, position_bias, wo_c)


# ---------------------- fused LN + dense FF + residual ------------------------

def _ff_kernel(y_ref, lnw_ref, wi_ref, wo_ref, o_ref, x_scr, acc_scr, *, eps, cdt):
    fi = pl.program_id(2)

    @pl.when(fi == 0)
    def _():
        x_scr[...] = _t5_rms_norm(y_ref[0], lnw_ref[...], eps).astype(cdt)
        acc_scr[...] = jnp.zeros_like(acc_scr)

    h1 = jnp.dot(x_scr[...], wi_ref[...], preferred_element_type=jnp.float32)   # (ts, tf)
    h1 = jnp.maximum(h1, 0.0).astype(cdt)                                       # ReLU
    acc_scr[...] += jnp.dot(h1, wo_ref[...], preferred_element_type=jnp.float32)

    @pl.when(fi == pl.num_programs(2) - 1)
    def _():
        o_ref[0] = (y_ref[0].astype(jnp.float32) + acc_scr[...]).astype(o_ref.dtype)


def switch_ff_layer(hidden, ln_weight, wi, wo, *, eps=DEF_EPS,
                    compute_dtype=jnp.bfloat16, ff_weight_vmem_budget=24 * _MIB):
    """hidden + wo(relu(wi(T5LayerNorm(hidden))))   (SwitchLayerFF, dense expert)."""
    B, S, D = hidden.shape
    F = wi.shape[1]
    assert wi.shape == (D, F) and wo.shape == (F, D) and ln_weight.shape == (D,)

    cdt = jnp.dtype(compute_dtype)
    wi_c, wo_c = _cast(wi, cdt), _cast(wo, cdt)
    lnw = ln_weight.astype(jnp.float32).reshape(1, D)

    ts = _pick_tile(S, B)
    n_s = S // ts

    # Tile the d_ff axis only when the full weights would not fit the VMEM budget;
    # otherwise keep them fully resident (constant block index => DMA'd once).
    if 2 * D * F * cdt.itemsize <= ff_weight_vmem_budget:
        tf = F
    else:
        tf = F
        for t in (4096, 2048, 1024, 512, 256, 128):
            if F % t == 0 and 2 * D * t * cdt.itemsize <= ff_weight_vmem_budget:
                tf = t
                break
    n_f = F // tf

    kernel = functools.partial(_ff_kernel, eps=eps, cdt=cdt)
    h_isz = hidden.dtype.itemsize
    block_bytes = (ts * D * h_isz + D * tf * cdt.itemsize
                   + tf * D * cdt.itemsize + ts * D * h_isz)
    scratch_bytes = ts * D * (cdt.itemsize + 4)
    weight_passes = 1 if n_f == 1 else B * n_s
    cost = pl.CostEstimate(
        flops=int(4 * B * S * D * F), transcendentals=0,
        bytes_accessed=int(2 * hidden.size * h_isz
                           + weight_passes * 2 * D * F * cdt.itemsize))

    return pl.pallas_call(
        kernel,
        out_shape=jax.ShapeDtypeStruct((B, S, D), hidden.dtype),
        grid_spec=pltpu.PrefetchScalarGridSpec(
            num_scalar_prefetch=0,
            grid=(B, n_s, n_f),
            in_specs=[
                pl.BlockSpec((1, ts, D), lambda b, si, fi: (b, si, 0)),
                pl.BlockSpec((1, D), lambda b, si, fi: (0, 0)),
                pl.BlockSpec((D, tf), lambda b, si, fi: (0, fi)),
                pl.BlockSpec((tf, D), lambda b, si, fi: (fi, 0)),
            ],
            out_specs=pl.BlockSpec((1, ts, D), lambda b, si, fi: (b, si, 0)),
            scratch_shapes=[
                pltpu.VMEM((ts, D), cdt),           # LN'd input (computed once per tile)
                pltpu.VMEM((ts, D), jnp.float32),   # FF output accumulator over d_ff tiles
            ]),
        compiler_params=pltpu.CompilerParams(
            dimension_semantics=("parallel", "parallel", "arbitrary"),
            vmem_limit_bytes=_vmem_limit(block_bytes, scratch_bytes)),
        cost_estimate=cost,
    )(hidden, lnw, wi_c, wo_c)


# ------------------------------ block wrapper ---------------------------------

def prepare_switch_params(params, compute_dtype=jnp.bfloat16):
    """Cast matmul weights to the compute dtype ONCE (avoid per-call wrapper casts)."""
    cdt = jnp.dtype(compute_dtype)
    return {name: {k: (v if k == "ln" else _cast(v, cdt)) for k, v in p.items()}
            for name, p in params.items()}


def switch_block_forward(params, *, n_heads, d_kv, is_decoder=False,
                         decoder_hidden_states=None, encoder_hidden_states=None,
                         decoder_position_bias=None, encoder_decoder_position_bias=None,
                         eps=DEF_EPS, compute_dtype=jnp.bfloat16,
                         ff_weight_vmem_budget=24 * _MIB):
    """Forward pass of SwitchBlock (dense FF path, dropout = identity / eval mode)."""
    def attn(hq, hkv, bias, p, self_attn):
        return switch_attention_layer(
            hq, hkv, bias, p["ln"], p["wq"], p["wk"], p["wv"], p["wo"],
            n_heads=n_heads, d_kv=d_kv, is_self_attention=self_attn,
            eps=eps, compute_dtype=compute_dtype)

    if is_decoder:
        h = attn(decoder_hidden_states, decoder_hidden_states,
                 decoder_position_bias, params["self_attn"], True)
        h = attn(h, encoder_hidden_states,
                 encoder_decoder_position_bias, params["cross_attn"], False)
    else:
        # PyTorch encoder path: self.layer[0](encoder_hidden_states, encoder_decoder_position_bias)
        h = attn(encoder_hidden_states, encoder_hidden_states,
                 encoder_decoder_position_bias, params["self_attn"], True)

    pf = params["ff"]
    return switch_ff_layer(h, pf["ln"], pf["wi"], pf["wo"], eps=eps,
                           compute_dtype=compute_dtype,
                           ff_weight_vmem_budget=ff_weight_vmem_budget)


# ------------------------------ pure-JAX reference ----------------------------

def _reference_block(hidden, bias, params, *, n_heads, d_kv, eps=DEF_EPS):
    def rms(x, w):
        var = jnp.mean(x.astype(jnp.float32) ** 2, axis=-1, keepdims=True)
        return x * lax.rsqrt(var + eps) * w

    B, S, D = hidden.shape
    inner = n_heads * d_kv
    pa, pf = params["self_attn"], params["ff"]

    x = rms(hidden, pa["ln"])
    q, k, v = x @ pa["wq"], x @ pa["wk"], x @ pa["wv"]
    sh = lambda t: t.reshape(B, S, n_heads, d_kv).transpose(0, 2, 1, 3)
    scores = jnp.einsum("bhqd,bhkd->bhqk", sh(q), sh(k)) + bias
    attn = jax.nn.softmax(scores.astype(jnp.float32), axis=-1).astype(scores.dtype)
    ctx = jnp.einsum("bhqk,bhkd->bhqd", attn, sh(v))
    ctx = ctx.transpose(0, 2, 1, 3).reshape(B, S, inner)
    h = hidden + ctx @ pa["wo"]

    y = rms(h, pf["ln"])
    return h + jnp.maximum(y @ pf["wi"], 0.0) @ pf["wo"]


# ------------------------------------ test ------------------------------------

def _make_params(key, D, inner, F):
    ks = jax.random.split(key, 8)
    n = lambda k, s, sc: sc * jax.random.normal(k, s, dtype=jnp.float32)
    return {
        "self_attn": {
            "ln": 1.0 + 0.1 * jax.random.normal(ks[0], (D,), dtype=jnp.float32),
            "wq": n(ks[1], (D, inner), 0.05),
            "wk": n(ks[2], (D, inner), 0.05),
            "wv": n(ks[3], (D, inner), 0.05),
            "wo": n(ks[4], (inner, D), 0.05),
        },
        "ff": {
            "ln": 1.0 + 0.1 * jax.random.normal(ks[5], (D,), dtype=jnp.float32),
            "wi": n(ks[6], (D, F), 0.05),
            "wo": n(ks[7], (F, D), 0.05),
        },
    }


def _run_config(key, *, B, S, D, H, DKV, F, compute_dtype, atol, rtol,
                ff_weight_vmem_budget=24 * _MIB):
    kp, kh, kb = jax.random.split(key, 3)
    params = _make_params(kp, D, H * DKV, F)
    hidden = jax.random.normal(kh, (B, S, D), dtype=jnp.float32)
    bias = 0.1 * jax.random.normal(kb, (B, H, S, S), dtype=jnp.float32)

    prepared = prepare_switch_params(params, compute_dtype)   # one-time weight cast
    out = switch_block_forward(prepared, n_heads=H, d_kv=DKV,
                               encoder_hidden_states=hidden,
                               encoder_decoder_position_bias=bias,
                               is_decoder=False, compute_dtype=compute_dtype,
                               ff_weight_vmem_budget=ff_weight_vmem_budget)
    out = jax.block_until_ready(out)
    ref = _reference_block(hidden, bias, params, n_heads=H, d_kv=DKV)

    assert out.shape == (B, S, D)
    assert jnp.allclose(out, ref, atol=atol, rtol=rtol), (
        f"mismatch (max abs err {jnp.max(jnp.abs(out - ref)):.4e})")
    return out


if __name__ == "__main__":
    key = jax.random.PRNGKey(0)
    k1, k2 = jax.random.split(key, 2)

    # Config 1: tiny shapes consistent with the module (d_model=32, 4 heads, d_kv=8,
    # d_ff=64, seq=8, batch=2).  Exact f32 compute path, tight tolerance.
    _run_config(k1, B=2, S=8, D=32, H=4, DKV=8, F=64,
                compute_dtype=jnp.float32, atol=1e-4, rtol=1e-4)

    # Config 2: exercises the flash tiling (2 q-tiles x 2 kv-tiles), the bf16 MXU path,
    # pre-projected K/V streaming, and the d_ff-tiled FF accumulator (budget forces
    # tf=512, n_f=2).  Looser tolerance for bf16 rounding.
    _run_config(k2, B=1, S=512, D=128, H=4, DKV=32, F=1024,
                compute_dtype=jnp.bfloat16, atol=1e-1, rtol=1e-1,
                ff_weight_vmem_budget=256 * 1024)

    print("KERNEL_OK")
</pallas_src>

<mosaic_0001>
module attributes {stable_mosaic.version = 11 : i64} {
  func.func @_proj_kernel(%arg0: i32, %arg1: i32, %arg2: memref<1x8x32xf32, #tpu.memory_space<vmem>>, %arg3: memref<1x32xf32, #tpu.memory_space<vmem>>, %arg4: memref<32x32xf32, #tpu.memory_space<vmem>>, %arg5: memref<32x32xf32, #tpu.memory_space<vmem>>, %arg6: memref<32x32xf32, #tpu.memory_space<vmem>>, %arg7: memref<1x8x32xf32, #tpu.memory_space<vmem>>, %arg8: memref<1x8x32xf32, #tpu.memory_space<vmem>>, %arg9: memref<1x8x32xf32, #tpu.memory_space<vmem>>) attributes {dimension_semantics = [#tpu.dimension_semantics<parallel>, #tpu.dimension_semantics<parallel>], iteration_bounds = array<i64: 2, 1>, scalar_prefetch = 0 : i64, scratch_operands = 0 : i64, tpu.core_type = #tpu.core_type<tc>, window_params = [{transform_indices = @transform_0, window_bounds = array<i64: 1, 8, 32>}, {pipeline_mode = #tpu.pipeline_mode<synchronous>, transform_indices = @transform_1, window_bounds = array<i64: 1, 32>}, {pipeline_mode = #tpu.pipeline_mode<synchronous>, transform_indices = @transform_2, window_bounds = array<i64: 32, 32>}, {pipeline_mode = #tpu.pipeline_mode<synchronous>, transform_indices = @transform_3, window_bounds = array<i64: 32, 32>}, {pipeline_mode = #tpu.pipeline_mode<synchronous>, transform_indices = @transform_4, window_bounds = array<i64: 32, 32>}, {transform_indices = @transform_5, window_bounds = array<i64: 1, 8, 32>}, {transform_indices = @transform_6, window_bounds = array<i64: 1, 8, 32>}, {transform_indices = @transform_7, window_bounds = array<i64: 1, 8, 32>}]} {
    %c0 = arith.constant 0 : index
    %c0_0 = arith.constant 0 : index
    %c0_1 = arith.constant 0 : index
    %0 = vector.load %arg2[%c0, %c0_0, %c0_1] : memref<1x8x32xf32, #tpu.memory_space<vmem>>, vector<1x8x32xf32>
    %1 = vector.shape_cast %0 : vector<1x8x32xf32> to vector<8x32xf32>
    %c0_2 = arith.constant 0 : index
    %c0_3 = arith.constant 0 : index
    %2 = vector.load %arg3[%c0_2, %c0_3] : memref<1x32xf32, #tpu.memory_space<vmem>>, vector<1x32xf32>
    %3 = arith.mulf %1, %1 : vector<8x32xf32>
    %cst = arith.constant dense<0.000000e+00> : vector<8xf32>
    %4 = vector.multi_reduction <add>, %3, %cst [1] : vector<8x32xf32> to vector<8xf32>
    %5 = vector.shape_cast %4 : vector<8xf32> to vector<8x1xf32>
    %cst_4 = arith.constant 3.200000e+01 : f32
    %6 = vector.broadcast %cst_4 : f32 to vector<8x1xf32>
    %7 = arith.divf %5, %6 : vector<8x1xf32>
    %cst_5 = arith.constant 9.99999997E-7 : f32
    %8 = vector.broadcast %cst_5 : f32 to vector<8x1xf32>
    %9 = arith.addf %7, %8 : vector<8x1xf32>
    %10 = math.rsqrt %9 : vector<8x1xf32>
    %11 = vector.broadcast %10 : vector<8x1xf32> to vector<8x32xf32>
    %12 = arith.mulf %1, %11 : vector<8x32xf32>
    %13 = vector.broadcast %2 : vector<1x32xf32> to vector<8x32xf32>
    %14 = arith.mulf %12, %13 : vector<8x32xf32>
    %c0_6 = arith.constant 0 : index
    %c0_7 = arith.constant 0 : index
    %15 = vector.load %arg4[%c0_6, %c0_7] : memref<32x32xf32, #tpu.memory_space<vmem>>, vector<32x32xf32>
    %cst_8 = arith.constant dense<0.000000e+00> : vector<8x32xf32>
    %16 = tpu.matmul %14, %15, %cst_8 {dimension_numbers = #tpu.dot_dimension_numbers<[1], [0], [0], [1], [0, 0, 1, 1], [], []>} : vector<8x32xf32>, vector<32x32xf32>, vector<8x32xf32> -> vector<8x32xf32>
    %c0_9 = arith.constant 0 : index
    %c0_10 = arith.constant 0 : index
    %c0_11 = arith.constant 0 : index
    %17 = vector.load %arg7[%c0_9, %c0_10, %c0_11] : memref<1x8x32xf32, #tpu.memory_space<vmem>>, vector<1x8x32xf32>
    %18 = vector.shape_cast %17 : vector<1x8x32xf32> to vector<8x32xf32>
    %19 = vector.shape_cast %16 : vector<8x32xf32> to vector<1x8x32xf32>
    tpu.vector_store %arg7[%c0_9, %c0_10, %c0_11], %19 {strides = array<i32>} : memref<1x8x32xf32, #tpu.memory_space<vmem>>, vector<1x8x32xf32>,
    %c0_12 = arith.constant 0 : index
    %c0_13 = arith.constant 0 : index
    %20 = vector.load %arg5[%c0_12, %c0_13] : memref<32x32xf32, #tpu.memory_space<vmem>>, vector<32x32xf32>
    %cst_14 = arith.constant dense<0.000000e+00> : vector<8x32xf32>
    %21 = tpu.matmul %14, %20, %cst_14 {dimension_numbers = #tpu.dot_dimension_numbers<[1], [0], [0], [1], [0, 0, 1, 1], [], []>} : vector<8x32xf32>, vector<32x32xf32>, vector<8x32xf32> -> vector<8x32xf32>
    %c0_15 = arith.constant 0 : index
    %c0_16 = arith.constant 0 : index
    %c0_17 = arith.constant 0 : index
    %22 = vector.load %arg8[%c0_15, %c0_16, %c0_17] : memref<1x8x32xf32, #tpu.memory_space<vmem>>, vector<1x8x32xf32>
    %23 = vector.shape_cast %22 : vector<1x8x32xf32> to vector<8x32xf32>
    %24 = vector.shape_cast %21 : vector<8x32xf32> to vector<1x8x32xf32>
    tpu.vector_store %arg8[%c0_15, %c0_16, %c0_17], %24 {strides = array<i32>} : memref<1x8x32xf32, #tpu.memory_space<vmem>>, vector<1x8x32xf32>,
    %c0_18 = arith.constant 0 : index
    %c0_19 = arith.constant 0 : index
    %25 = vector.load %arg6[%c0_18, %c0_19] : memref<32x32xf32, #tpu.memory_space<vmem>>, vector<32x32xf32>
    %cst_20 = arith.constant dense<0.000000e+00> : vector<8x32xf32>
    %26 = tpu.matmul %14, %25, %cst_20 {dimension_numbers = #tpu.dot_dimension_numbers<[1], [0], [0], [1], [0, 0, 1, 1], [], []>} : vector<8x32xf32>, vector<32x32xf32>, vector<8x32xf32> -> vector<8x32xf32>
    %c0_21 = arith.constant 0 : index
    %c0_22 = arith.constant 0 : index
    %c0_23 = arith.constant 0 : index
    %27 = vector.load %arg9[%c0_21, %c0_22, %c0_23] : memref<1x8x32xf32, #tpu.memory_space<vmem>>, vector<1x8x32xf32>
    %28 = vector.shape_cast %27 : vector<1x8x32xf32> to vector<8x32xf32>
    %29 = vector.shape_cast %26 : vector<8x32xf32> to vector<1x8x32xf32>
    tpu.vector_store %arg9[%c0_21, %c0_22, %c0_23], %29 {strides = array<i32>} : memref<1x8x32xf32, #tpu.memory_space<vmem>>, vector<1x8x32xf32>,
    return
  }
  func.func @transform_0(%arg0: i32, %arg1: i32) -> (i32, i32, i32) {
    %c0_i32 = arith.constant 0 : i32
    %c0_i32_0 = arith.constant 0 : i32
    return %arg0, %arg1, %c0_i32 : i32, i32, i32
  }
  func.func @transform_1(%arg0: i32, %arg1: i32) -> (i32, i32) {
    %c0_i32 = arith.constant 0 : i32
    %c0_i32_0 = arith.constant 0 : i32
    %c0_i32_1 = arith.constant 0 : i32
    return %c0_i32, %c0_i32_0 : i32, i32
  }
  func.func @transform_2(%arg0: i32, %arg1: i32) -> (i32, i32) {
    %c0_i32 = arith.constant 0 : i32
    %c0_i32_0 = arith.constant 0 : i32
    %c0_i32_1 = arith.constant 0 : i32
    return %c0_i32, %c0_i32_0 : i32, i32
  }
  func.func @transform_3(%arg0: i32, %arg1: i32) -> (i32, i32) {
    %c0_i32 = arith.constant 0 : i32
    %c0_i32_0 = arith.constant 0 : i32
    %c0_i32_1 = arith.constant 0 : i32
    return %c0_i32, %c0_i32_0 : i32, i32
  }
  func.func @transform_4(%arg0: i32, %arg1: i32) -> (i32, i32) {
    %c0_i32 = arith.constant 0 : i32
    %c0_i32_0 = arith.constant 0 : i32
    %c0_i32_1 = arith.constant 0 : i32
    return %c0_i32, %c0_i32_0 : i32, i32
  }
  func.func @transform_5(%arg0: i32, %arg1: i32) -> (i32, i32, i32) {
    %c0_i32 = arith.constant 0 : i32
    %c0_i32_0 = arith.constant 0 : i32
    return %arg0, %arg1, %c0_i32 : i32, i32, i32
  }
  func.func @transform_6(%arg0: i32, %arg1: i32) -> (i32, i32, i32) {
    %c0_i32 = arith.constant 0 : i32
    %c0_i32_0 = arith.constant 0 : i32
    return %arg0, %arg1, %c0_i32 : i32, i32, i32
  }
  func.func @transform_7(%arg0: i32, %arg1: i32) -> (i32, i32, i32) {
    %c0_i32 = arith.constant 0 : i32
    %c0_i32_0 = arith.constant 0 : i32
    return %arg0, %arg1, %c0_i32 : i32, i32, i32
  }
}

</mosaic_0001>

<llo_original>
// kernel: tpu_custom_call.1
$region0: #{tpu_custom_call.1}
  #allocation0 [shape = 'u32[]', space=smem, size = 0x4, offset = 0x4, fixed_abs, tag = 'smem constant byte address 0x4 - core index']
  #allocation1 [shape = 'u32[144,128]{1,0:T(1,128)}', space=vmem, size = 0x12000, scoped, tag = 'internal scratch']
  %s0 = inlined_call_operand.hbm [shape: f32[2,8,32], index: 0, kind: input, shape index: {}]
  %s1 = inlined_call_operand.vmem [shape: f32[1,32], index: 1, kind: input, shape index: {}]
  %s2 = inlined_call_operand.hbm [shape: f32[32,32], index: 2, kind: input, shape index: {}]
  %s3 = inlined_call_operand.hbm [shape: f32[32,32], index: 3, kind: input, shape index: {}]
  %s4 = inlined_call_operand.hbm [shape: f32[32,32], index: 4, kind: input, shape index: {}]
  %s5 = inlined_call_operand.hbm [shape: f32[2,8,32], index: 5, kind: output, shape index: {0}]
  %s6 = inlined_call_operand.hbm [shape: f32[2,8,32], index: 6, kind: output, shape index: {1}]
  %s7 = inlined_call_operand.hbm [shape: f32[2,8,32], index: 7, kind: output, shape index: {2}]
  %8 = xla_tuple %s5, %s6, %s7
  %s9 = sld [smem:[#allocation0]]
  $region85: #{tpu_custom_call.1} parent=0
    _
  %s11 = ssub.s32 1, %s9
  %s12 = scalar_select 0, %s11, %s9
  $region1: #{tpu_custom_call.1} parent=0
    #allocation2 [shape = 'u8[8192]{0}', space=vmem, size = 0x2000, scoped, tag = 'input window, operand 0']
    #allocation3 [shape = 's32[2]{0}', space=sflag, size = 0x8, scoped, tag = 'scoped memory for tpu_custom_call.1']
    #allocation4 [shape = 's32[2]{0}', space=sflag, size = 0x8, scoped, tag = 'scoped memory for tpu_custom_call.1']
    #allocation5 [shape = 'u8[16384]{0}', space=vmem, size = 0x4000, scoped, tag = 'input window, operand 2, single buffered']
    #allocation6 [shape = 's32[1]{0}', space=sflag, size = 0x4, scoped, tag = 'scoped memory for tpu_custom_call.1']
    #allocation7 [shape = 'u8[16384]{0}', space=vmem, size = 0x4000, scoped, tag = 'input window, operand 3, single buffered']
    #allocation8 [shape = 'u8[16384]{0}', space=vmem, size = 0x4000, scoped, tag = 'input window, operand 4, single buffered']
    #allocation9 [shape = 's32[1]{0}', space=sflag, size = 0x4, scoped, tag = 'scoped memory for tpu_custom_call.1']
    #allocation10 [shape = 'u8[8192]{0}', space=vmem, size = 0x2000, scoped, tag = 'output window, operand 0']
    #allocation11 [shape = 'u8[8192]{0}', space=vmem, size = 0x2000, scoped, tag = 'output window, operand 1']
    #allocation12 [shape = 's32[2]{0}', space=sflag, size = 0x8, scoped, tag = 'scoped memory for tpu_custom_call.1']
    #allocation13 [shape = 'u8[8192]{0}', space=vmem, size = 0x2000, scoped, tag = 'output window, operand 2']
    %13 = vsyncpa [#allocation3], 0
    %s14 = scalar_lea.sflag [#allocation3], 1
    %15 = vsyncpa %s14, 0
    %16 = vsyncpa [#allocation6], 0
    %17 = vsyncpa [#allocation9], 0
    %18 = vsyncpa [#allocation4], 0
    %s19 = scalar_lea.sflag [#allocation4], 1
    %20 = vsyncpa %s19, 0
    %21 = vsyncpa [#allocation12], 0
    %s22 = scalar_lea.sflag [#allocation12], 1
    %23 = vsyncpa %s22, 0
    loop: start=0, step=1, limit=4
    $region2: #{tpu_custom_call.1} parent=1 // loop_pre_header
      _
    $region3: #{tpu_custom_call.1} parent=1 // loop_header
      %s25 = sphi 0, %s29
      %p26 = scmp.ge.s32.totalorder %s25, 4
      %s32 = sphi 0, %s44
      %s33 = sphi 0, %s40
      %s34 = sphi 0, %s32
      %s35 = sphi 0, %s33
      %s36 = sphi 0, %s34
      %s37 = sphi 0, %s35
      %s49 = sphi 0, %s51
      %s52 = sphi 0, %s49
      %s53 = sphi 0, %s52
      %s69 = sphi 0, %s53
      %s73 = sphi 0, %s73
      %s75 = sphi 0, %s73
      %s76 = sphi 0, %s75
      %s90 = sphi 0, %s76
      %s94 = sphi 0, %s94
      %s96 = sphi 0, %s94
      %s97 = sphi 0, %s96
      %s111 = sphi 0, %s97
      %s115 = sphi 0, %s115
      %s117 = sphi 0, %s115
      %s118 = sphi 0, %s117
      %s132 = sphi 0, %s118
      %s136 = sphi 0, %s136
      %s138 = sphi 0, %s136
      %s139 = sphi 0, %s138
      %s153 = sphi 0, %s139
      %s161 = sphi 0, %s163
      %s164 = sphi 0, %s161
      %s165 = sphi 0, %s164
      %s181 = sphi 0, %s165
      %s189 = sphi 0, %s191
      %s192 = sphi 0, %s189
      %s193 = sphi 0, %s192
      %s209 = sphi 0, %s193
      %s217 = sphi 0, %s219
      %s220 = sphi 0, %s217
      %s221 = sphi 0, %s220
      %s237 = sphi 0, %s221
    $region4: #{tpu_custom_call.1} parent=1 // loop_header_branch
      %28 = sbr.rel (%p26) target = $region8
    $region5: #{tpu_custom_call.1} parent=1 // loop_body
      %s30 = ssub.s32 %s25, 1
      %s31 = ssub.s32 %s25, 2
      %s38 = sadd.s32 1, %s33
      %p39 = scmp.ge.s32.totalorder %s38, 1
      %s40 = scalar_select %p39, 0, %s38
      %s41 = sadd.s32 1, %s32
      %s42 = scalar_select %p39, %s41, %s32
      %p43 = scmp.ge.s32.totalorder %s42, 2
      %s44 = scalar_select %p43, 0, %s42
      %s45 = ssub.s32 %s32, %s44
      %s46 = ssub.s32 %s33, %s40
      %s47 = sor.u32 %s45, %s46
      %p48 = scmp.eq.s32.totalorder %s47, 0
      %s50 = sadd.s32 %s49, 1
      %s51 = scalar_select %p48, %s49, %s50
      %p54 = pneg %p48
      %p55 = scmp.eq.s32.totalorder %s25, 1
      %p56 = por %p54, %p55
      %p57 = scmp.ne.s32.totalorder %s49, %s52
      %p58 = scmp.eq.s32.totalorder %s25, 0
      %p59 = por %p57, %p58
      %p60 = scmp.ne.s32.totalorder %s49, %s52
      %p61 = scmp.eq.s32.totalorder %s30, 1
      %p62 = por %p60, %p61
      %p63 = scmp.ne.s32.totalorder %s52, %s53
      %p64 = scmp.eq.s32.totalorder %s30, 0
      %p65 = por %p63, %p64
      %p66 = scmp.ne.s32.totalorder %s52, %s53
      %p67 = scmp.eq.s32.totalorder %s31, 1
      %p68 = por %p66, %p67
      %p70 = scmp.ne.s32.totalorder %s53, %s69
      %p71 = scmp.eq.s32.totalorder %s31, 0
      %p72 = por %p70, %p71
      %s74 = sadd.s32 %s73, 1
      %p77 = scmp.eq.s32.totalorder %s25, 1
      %p78 = scmp.ne.s32.totalorder %s73, %s75
      %p79 = scmp.eq.s32.totalorder %s25, 0
      %p80 = por %p78, %p79
      %p81 = scmp.ne.s32.totalorder %s73, %s75
      %p82 = scmp.eq.s32.totalorder %s30, 1
      %p83 = por %p81, %p82
      %p84 = scmp.ne.s32.totalorder %s75, %s76
      %p85 = scmp.eq.s32.totalorder %s30, 0
      %p86 = por %p84, %p85
      %p87 = scmp.ne.s32.totalorder %s75, %s76
      %p88 = scmp.eq.s32.totalorder %s31, 1
      %p89 = por %p87, %p88
      %p91 = scmp.ne.s32.totalorder %s76, %s90
      %p92 = scmp.eq.s32.totalorder %s31, 0
      %p93 = por %p91, %p92
      %s95 = sadd.s32 %s94, 1
      %p98 = scmp.eq.s32.totalorder %s25, 1
      %p99 = scmp.ne.s32.totalorder %s94, %s96
      %p100 = scmp.eq.s32.totalorder %s25, 0
      %p101 = por %p99, %p100
      %p102 = scmp.ne.s32.totalorder %s94, %s96
      %p103 = scmp.eq.s32.totalorder %s30, 1
      %p104 = por %p102, %p103
      %p105 = scmp.ne.s32.totalorder %s96, %s97
      %p106 = scmp.eq.s32.totalorder %s30, 0
      %p107 = por %p105, %p106
      %p108 = scmp.ne.s32.totalorder %s96, %s97
      %p109 = scmp.eq.s32.totalorder %s31, 1
      %p110 = por %p108, %p109
      %p112 = scmp.ne.s32.totalorder %s97, %s111
      %p113 = scmp.eq.s32.totalorder %s31, 0
      %p114 = por %p112, %p113
      %s116 = sadd.s32 %s115, 1
      %p119 = scmp.eq.s32.totalorder %s25, 1
      %p120 = scmp.ne.s32.totalorder %s115, %s117
      %p121 = scmp.eq.s32.totalorder %s25, 0
      %p122 = por %p120, %p121
      %p123 = scmp.ne.s32.totalorder %s115, %s117
      %p124 = scmp.eq.s32.totalorder %s30, 1
      %p125 = por %p123, %p124
      %p126 = scmp.ne.s32.totalorder %s117, %s118
      %p127 = scmp.eq.s32.totalorder %s30, 0
      %p128 = por %p126, %p127
      %p129 = scmp.ne.s32.totalorder %s117, %s118
      %p130 = scmp.eq.s32.totalorder %s31, 1
      %p131 = por %p129, %p130
      %p133 = scmp.ne.s32.totalorder %s118, %s132
      %p134 = scmp.eq.s32.totalorder %s31, 0
      %p135 = por %p133, %p134
      %s137 = sadd.s32 %s136, 1
      %p140 = scmp.eq.s32.totalorder %s25, 1
      %p141 = scmp.ne.s32.totalorder %s136, %s138
      %p142 = scmp.eq.s32.totalorder %s25, 0
      %p143 = por %p141, %p142
      %p144 = scmp.ne.s32.totalorder %s136, %s138
      %p145 = scmp.eq.s32.totalorder %s30, 1
      %p146 = por %p144, %p145
      %p147 = scmp.ne.s32.totalorder %s138, %s139
      %p148 = scmp.eq.s32.totalorder %s30, 0
      %p149 = por %p147, %p148
      %p150 = scmp.ne.s32.totalorder %s138, %s139
      %p151 = scmp.eq.s32.totalorder %s31, 1
      %p152 = por %p150, %p151
      %p154 = scmp.ne.s32.totalorder %s139, %s153
      %p155 = scmp.eq.s32.totalorder %s31, 0
      %p156 = por %p154, %p155
      %s157 = ssub.s32 %s32, %s44
      %s158 = ssub.s32 %s33, %s40
      %s159 = sor.u32 %s157, %s158
      %p160 = scmp.eq.s32.totalorder %s159, 0
      %s162 = sadd.s32 %s161, 1
      %s163 = scalar_select %p160, %s161, %s162
      %p166 = pneg %p160
      %p167 = scmp.eq.s32.totalorder %s25, 1
      %p168 = por %p166, %p167
      %p169 = scmp.ne.s32.totalorder %s161, %s164
      %p170 = scmp.eq.s32.totalorder %s25, 0
      %p171 = por %p169, %p170
      %p172 = scmp.ne.s32.totalorder %s161, %s164
      %p173 = scmp.eq.s32.totalorder %s30, 1
      %p174 = por %p172, %p173
      %p175 = scmp.ne.s32.totalorder %s164, %s165
      %p176 = scmp.eq.s32.totalorder %s30, 0
      %p177 = por %p175, %p176
      %p178 = scmp.ne.s32.totalorder %s164, %s165
      %p179 = scmp.eq.s32.totalorder %s31, 1
      %p180 = por %p178, %p179
      %p182 = scmp.ne.s32.totalorder %s165, %s181
      %p183 = scmp.eq.s32.totalorder %s31, 0
      %p184 = por %p182, %p183
      %s185 = ssub.s32 %s32, %s44
      %s186 = ssub.s32 %s33, %s40
      %s187 = sor.u32 %s185, %s186
      %p188 = scmp.eq.s32.totalorder %s187, 0
      %s190 = sadd.s32 %s189, 1
      %s191 = scalar_select %p188, %s189, %s190
      %p194 = pneg %p188
      %p195 = scmp.eq.s32.totalorder %s25, 1
      %p196 = por %p194, %p195
      %p197 = scmp.ne.s32.totalorder %s189, %s192
      %p198 = scmp.eq.s32.totalorder %s25, 0
      %p199 = por %p197, %p198
      %p200 = scmp.ne.s32.totalorder %s189, %s192
      %p201 = scmp.eq.s32.totalorder %s30, 1
      %p202 = por %p200, %p201
      %p203 = scmp.ne.s32.totalorder %s192, %s193
      %p204 = scmp.eq.s32.totalorder %s30, 0
      %p205 = por %p203, %p204
      %p206 = scmp.ne.s32.totalorder %s192, %s193
      %p207 = scmp.eq.s32.totalorder %s31, 1
      %p208 = por %p206, %p207
      %p210 = scmp.ne.s32.totalorder %s193, %s209
      %p211 = scmp.eq.s32.totalorder %s31, 0
      %p212 = por %p210, %p211
      %s213 = ssub.s32 %s32, %s44
      %s214 = ssub.s32 %s33, %s40
      %s215 = sor.u32 %s213, %s214
      %p216 = scmp.eq.s32.totalorder %s215, 0
      %s218 = sadd.s32 %s217, 1
      %s219 = scalar_select %p216, %s217, %s218
      %p222 = pneg %p216
      %p223 = scmp.eq.s32.totalorder %s25, 1
      %p224 = por %p222, %p223
      %p225 = scmp.ne.s32.totalorder %s217, %s220
      %p226 = scmp.eq.s32.totalorder %s25, 0
      %p227 = por %p225, %p226
      %p228 = scmp.ne.s32.totalorder %s217, %s220
      %p229 = scmp.eq.s32.totalorder %s30, 1
      %p230 = por %p228, %p229
      %p231 = scmp.ne.s32.totalorder %s220, %s221
      %p232 = scmp.eq.s32.totalorder %s30, 0
      %p233 = por %p231, %p232
      %p234 = scmp.ne.s32.totalorder %s220, %s221
      %p235 = scmp.eq.s32.totalorder %s31, 1
      %p236 = por %p234, %p235
      %p238 = scmp.ne.s32.totalorder %s221, %s237
      %p239 = scmp.eq.s32.totalorder %s31, 0
      %p240 = por %p238, %p239
      %p241 = scmp.le.s32.totalorder 1, %s25
      %p242 = scmp.lt.s32.totalorder %s25, 3
      %p243 = pnand %p241, %p242
      %p244 = pneg %p243
      // Predicated region
      $region9: #{tpu_custom_call.1} parent=5 // pred_check
        _
      $region10: #{tpu_custom_call.1} parent=5 // pred_check_branch
        %246 = sbr.rel (%p243) target = $region12
      $region11: #{tpu_custom_call.1} parent=5 // pred_region
        %s247 = ssub.s32 %s25, 1
        // Predicated region
        $region13: #{tpu_custom_call.1} parent=11 // pred_check
          %p248 = pneg %p86
        $region14: #{tpu_custom_call.1} parent=11 // pred_check_branch
          %250 = sbr.rel (%p248) target = $region16
        $region15: #{tpu_custom_call.1} parent=11 // pred_region
          _
        $region16: #{tpu_custom_call.1} parent=11 // pred_fallthru
          _
        // Predicated region
        $region17: #{tpu_custom_call.1} parent=11 // pred_check
          %p251 = pneg %p107
        $region18: #{tpu_custom_call.1} parent=11 // pred_check_branch
          %253 = sbr.rel (%p251) target = $region20
        $region19: #{tpu_custom_call.1} parent=11 // pred_region
          %s255 = ssub.s32 512, 512
          %256 = vsyncadd [#allocation6], %s255
          %s257 = sshll.u32 [#allocation5], 4
          %s258 = int_to_ptr.vmem [resolvable:$true] %s257
          %263 = dma.hbm_to_vmem [thread:$0]  %s2, 512, %s258, [#allocation6], 128, 128, 8
        $region20: #{tpu_custom_call.1} parent=11 // pred_fallthru
          _
        // Predicated region
        $region21: #{tpu_custom_call.1} parent=11 // pred_check
          %p264 = pneg %p128
        $region22: #{tpu_custom_call.1} parent=11 // pred_check_branch
          %266 = sbr.rel (%p264) target = $region24
        $region23: #{tpu_custom_call.1} parent=11 // pred_region
          %s268 = ssub.s32 512, 512
          %269 = vsyncadd [#allocation6], %s268
          %s270 = sshll.u32 [#allocation7], 4
          %s271 = int_to_ptr.vmem [resolvable:$true] %s270
          %276 = dma.hbm_to_vmem [thread:$0]  %s3, 512, %s271, [#allocation6], 128, 128, 8
        $region24: #{tpu_custom_call.1} parent=11 // pred_fallthru
          _
        // Predicated region
        $region25: #{tpu_custom_call.1} parent=11 // pred_check
          %p277 = pneg %p149
        $region26: #{tpu_custom_call.1} parent=11 // pred_check_branch
          %279 = sbr.rel (%p277) target = $region28
        $region27: #{tpu_custom_call.1} parent=11 // pred_region
          %s281 = ssub.s32 512, 512
          %282 = vsyncadd [#allocation9], %s281
          %s283 = sshll.u32 [#allocation8], 4
          %s284 = int_to_ptr.vmem [resolvable:$true] %s283
          %289 = dma.hbm_to_vmem [thread:$0]  %s4, 512, %s284, [#allocation9], 128, 128, 8
        $region28: #{tpu_custom_call.1} parent=11 // pred_fallthru
          _
      $region12: #{tpu_custom_call.1} parent=5 // pred_fallthru
        _
      %p290 = scmp.lt.s32.totalorder %s25, 2
      // Predicated region
      $region29: #{tpu_custom_call.1} parent=5 // pred_check
        %p291 = pneg %p290
      $region30: #{tpu_custom_call.1} parent=5 // pred_check_branch
        %293 = sbr.rel (%p291) target = $region32
      $region31: #{tpu_custom_call.1} parent=5 // pred_region
        // Predicated region
        $region33: #{tpu_custom_call.1} parent=31 // pred_check
          %p294 = pneg %p59
        $region34: #{tpu_custom_call.1} parent=31 // pred_check_branch
          %296 = sbr.rel (%p294) target = $region36
        $region35: #{tpu_custom_call.1} parent=31 // pred_region
          %s297 = sand.u32 %s49, 1
          %s298 = scalar_lea.sflag [#allocation3], %s297
          %s299 = sand.u32 %s49, 1
          %s300 = smul.addr %s299, 8
          %s301 = scalar_lea.vmem [#allocation2], %s300
          %s303 = ssub.s32 128, 128
          %304 = vsyncadd %s298, %s303
          %s305 = sadd.s32 %s33, %s32
          %s306 = smul.addr %s305, 128
          %s307 = scalar_lea.hbm %s0, %s306
          %s309 = sshll.u32 %s301, 4
          %s310 = int_to_ptr.vmem [resolvable:$true] %s309
          %312 = dma.hbm_to_vmem [thread:$0]  %s307, 128, %s310, %s298
        $region36: #{tpu_custom_call.1} parent=31 // pred_fallthru
          _
      $region32: #{tpu_custom_call.1} parent=5 // pred_fallthru
        _
      %p313 = scmp.le.s32.totalorder 1, %s25
      %p314 = scmp.lt.s32.totalorder %s25, 3
      %p315 = pnand %p313, %p314
      %p316 = pneg %p315
      // Predicated region
      $region37: #{tpu_custom_call.1} parent=5 // pred_check
        _
      $region38: #{tpu_custom_call.1} parent=5 // pred_check_branch
        %318 = sbr.rel (%p315) target = $region40
      $region39: #{tpu_custom_call.1} parent=5 // pred_region
        %s319 = ssub.s32 %s25, 1
        %s320 = sand.u32 %s52, 1
        %s321 = scalar_lea.sflag [#allocation3], %s320
        %s322 = sand.u32 %s52, 1
        %s323 = smul.addr %s322, 8
        %s324 = scalar_lea.vmem [#allocation2], %s323
        // Predicated region
        $region41: #{tpu_custom_call.1} parent=39 // pred_check
          %p325 = pneg %p65
        $region42: #{tpu_custom_call.1} parent=39 // pred_check_branch
          %327 = sbr.rel (%p325) target = $region44
        $region43: #{tpu_custom_call.1} parent=39 // pred_region
          %328 = dma.done %s321, 128
        $region44: #{tpu_custom_call.1} parent=39 // pred_fallthru
          _
        // Predicated region
        $region45: #{tpu_custom_call.1} parent=39 // pred_check
          %p329 = pneg %p107
        $region46: #{tpu_custom_call.1} parent=39 // pred_check_branch
          %331 = sbr.rel (%p329) target = $region48
        $region47: #{tpu_custom_call.1} parent=39 // pred_region
          %332 = dma.done [#allocation6], 512
        $region48: #{tpu_custom_call.1} parent=39 // pred_fallthru
          _
        // Predicated region
        $region49: #{tpu_custom_call.1} parent=39 // pred_check
          %p333 = pneg %p128
        $region50: #{tpu_custom_call.1} parent=39 // pred_check_branch
          %335 = sbr.rel (%p333) target = $region52
        $region51: #{tpu_custom_call.1} parent=39 // pred_region
          %336 = dma.done [#allocation6], 512
        $region52: #{tpu_custom_call.1} parent=39 // pred_fallthru
          _
        // Predicated region
        $region53: #{tpu_custom_call.1} parent=39 // pred_check
          %p337 = pneg %p149
        $region54: #{tpu_custom_call.1} parent=39 // pred_check_branch
          %339 = sbr.rel (%p337) target = $region56
        $region55: #{tpu_custom_call.1} parent=39 // pred_region
          %340 = dma.done [#allocation9], 512
        $region56: #{tpu_custom_call.1} parent=39 // pred_fallthru
          _
        %s341 = sand.u32 %s52, 1
        %s342 = scalar_lea.sflag [#allocation3], %s341
        %s343 = sand.u32 %s52, 1
        %s344 = smul.addr %s343, 8
        %s345 = scalar_lea.vmem [#allocation2], %s344
        %p346 = pneg %p65
        %p347 = pneg %p62
        %p348 = pneg %p86
        %p349 = pneg %p83
        %p350 = pneg %p107
        %p351 = pneg %p104
        %p352 = pneg %p128
        %p353 = pneg %p125
        %p354 = pneg %p149
        %p355 = pneg %p146
        %p356 = pneg %p177
        %p357 = pneg %p174
        %s358 = sand.u32 %s164, 1
        %s359 = scalar_lea.sflag [#allocation4], %s358
        %s360 = sand.u32 %s164, 1
        %s361 = smul.addr %s360, 8
        %s362 = scalar_lea.vmem [#allocation10], %s361
        %p363 = pneg %p205
        %p364 = pneg %p202
        %s365 = sand.u32 %s30, 1
        %s366 = scalar_lea.sflag [#allocation12], %s365
        %s367 = sand.u32 %s192, 1
        %s368 = smul.addr %s367, 8
        %s369 = scalar_lea.vmem [#allocation11], %s368
        %p370 = pneg %p233
        %p371 = pneg %p230
        %s372 = sand.u32 %s30, 1
        %s373 = scalar_lea.sflag [#allocation12], %s372
        %s374 = sand.u32 %s220, 1
        %s375 = smul.addr %s374, 8
        %s376 = scalar_lea.vmem [#allocation13], %s375
        %v377 = vld [vmem:[%s324] sm:$0xff]
        %v378 = vld [vmem:[%s1] sm:$0x1]
        %v379 = vmul.f32 %v377, %v377
        %vm380 = vcmask 261120
        %v381 = vsel %vm380, %v379, 0.0
        %382 = vadd.xlane.f32.xlu0 %v381
        %v383 = vpop.xlane.xlu0 %382
        %v384 = vrcp.pop 32.0
        %v385 = vmul.f32 %v383, %v384
        %v386 = vadd.f32 %v385, 1e-06
        %v387 = vrsqrt.pop %v386
        %v388 = vmul.f32 %v377, %v387
        %v390 = vlaneseq
        %v391 = vshrl.u32 %v390, 7
        %v392 = vsub.s32 0, %v391
        %v393 = vrot.slane %v378, %v392
        %v395 = vmul.f32 %v388, %v393
        %v396 = vld [vmem:[#allocation5] sm:$0xff]
        %v397 = vld [vmem:[#allocation5 + $0x8] sm:$0xff]
        %v398 = vld [vmem:[#allocation5 + $0x10] sm:$0xff]
        %v399 = vld [vmem:[#allocation5 + $0x18] sm:$0xff]
        %v401 = vsel %vm380, %v395, 0
        %403 = vmatprep.subr.mxu0 0.0
        %404 = vmatpush1.msra.mxu0 %v396
        %405 = vmatprep.subr.mxu0 0.0
        %406 = vmatpush1.msra.mxu0 %v397
        %407 = vmatprep.subr.mxu0 0.0
        %408 = vmatpush1.msra.mxu0 %v398
        %409 = vmatprep.subr.mxu0 0.0
        %410 = vmatpush1.msra.mxu0 %v399
        %411 = vmatprep.subr.mxu0 0.0
        %412 = vmatpush1.msra.mxu0 0.0
        %413 = vmatprep.subr.mxu0 0.0
        %414 = vmatpush1.msra.mxu0 0.0
        %415 = vmatprep.subr.mxu0 0.0
        %416 = vmatpush1.msra.mxu0 0.0
        %417 = vmatprep.subr.mxu0 0.0
        %418 = vmatpush1.msra.mxu0 0.0
        %419 = vmatprep.subr.mxu0 0.0
        %420 = vmatpush1.msra.mxu0 0.0
        %421 = vmatprep.subr.mxu0 0.0
        %422 = vmatpush1.msra.mxu0 0.0
        %423 = vmatprep.subr.mxu0 0.0
        %424 = vmatpush1.msra.mxu0 0.0
        %425 = vmatprep.subr.mxu0 0.0
        %426 = vmatpush1.msra.mxu0 0.0
        %427 = vmatprep.subr.mxu0 0.0
        %428 = vmatpush1.msra.mxu0 0.0
        %429 = vmatprep.subr.mxu0 0.0
        %430 = vmatpush1.msra.mxu0 0.0
        %431 = vmatprep.subr.mxu0 0.0
        %432 = vmatpush1.msra.mxu0 0.0
        %433 = vmatprep.subr.mxu0 0.0
        %434 = vmatpush1.msra.mxu0 0.0
        %435 = vmatprep.subr.mxu0 0.0
        %436 = vmatpush1.msra.mxu0 0.0
        %437 = vmatprep.subr.mxu0 0.0
        %438 = vmatpush1.msra.mxu0 0.0
        %439 = vmatprep.subr.mxu0 0.0
        %440 = vmatpush1.msra.mxu0 0.0
        %441 = vmatprep.subr.mxu0 0.0
        %442 = vmatpush1.msra.mxu0 0.0
        %443 = vmatprep.subr.mxu0 0.0
        %444 = vmatpush1.msra.mxu0 0.0
        %445 = vmatprep.subr.mxu0 0.0
        %446 = vmatpush1.msra.mxu0 0.0
        %447 = vmatprep.subr.mxu0 0.0
        %448 = vmatpush1.msra.mxu0 0.0
        %449 = vmatprep.subr.mxu0 0.0
        %450 = vmatpush1.msra.mxu0 0.0
        %451 = vmatprep.subr.mxu0 0.0
        %452 = vmatpush1.msra.mxu0 0.0
        %453 = vmatprep.subr.mxu0 0.0
        %454 = vmatpush1.msra.mxu0 0.0
        %455 = vmatprep.subr.mxu0 0.0
        %456 = vmatpush1.msra.mxu0 0.0
        %457 = vmatprep.subr.mxu0 0.0
        %458 = vmatpush1.msra.mxu0 0.0
        %459 = vmatprep.subr.mxu0 0.0
        %460 = vmatpush1.msra.mxu0 0.0
        %461 = vmatprep.subr.mxu0 0.0
        %462 = vmatpush1.msra.mxu0 0.0
        %463 = vmatprep.subr.mxu0 0.0
        %464 = vmatpush1.msra.mxu0 0.0
        %465 = vmatprep.subr.mxu0 0.0
        %466 = vmatpush1.msra.mxu0 0.0
        %467 = vmatprep.mubr.f32.mxu0 0.0
        %468 = vmatmul.mubr.f32.gmra.mrb[0].mxu0 %v401
        %v469 = vpop.f32.mrb[0].mxu0
        %v470 = vadd.f32 0.0, %v469
        %v471 = vpop.f32.mrb[0].mxu0
        %472 = vdwg.mxu0
        %473 = vst.msk [vmem:[%s362] sm:$0xff] %vm380, %v470
        %v474 = vld [vmem:[#allocation7] sm:$0xff]
        %v475 = vld [vmem:[#allocation7 + $0x8] sm:$0xff]
        %v476 = vld [vmem:[#allocation7 + $0x10] sm:$0xff]
        %v477 = vld [vmem:[#allocation7 + $0x18] sm:$0xff]
        %478 = vmatprep.subr.mxu0 0.0
        %479 = vmatpush1.msra.mxu0 %v474
        %480 = vmatprep.subr.mxu0 0.0
        %481 = vmatpush1.msra.mxu0 %v475
        %482 = vmatprep.subr.mxu0 0.0
        %483 = vmatpush1.msra.mxu0 %v476
        %484 = vmatprep.subr.mxu0 0.0
        %485 = vmatpush1.msra.mxu0 %v477
        %486 = vmatprep.subr.mxu0 0.0
        %487 = vmatpush1.msra.mxu0 0.0
        %488 = vmatprep.subr.mxu0 0.0
        %489 = vmatpush1.msra.mxu0 0.0
        %490 = vmatprep.subr.mxu0 0.0
        %491 = vmatpush1.msra.mxu0 0.0
        %492 = vmatprep.subr.mxu0 0.0
        %493 = vmatpush1.msra.mxu0 0.0
        %494 = vmatprep.subr.mxu0 0.0
        %495 = vmatpush1.msra.mxu0 0.0
        %496 = vmatprep.subr.mxu0 0.0
        %497 = vmatpush1.msra.mxu0 0.0
        %498 = vmatprep.subr.mxu0 0.0
        %499 = vmatpush1.msra.mxu0 0.0
        %500 = vmatprep.subr.mxu0 0.0
        %501 = vmatpush1.msra.mxu0 0.0
        %502 = vmatprep.subr.mxu0 0.0
        %503 = vmatpush1.msra.mxu0 0.0
        %504 = vmatprep.subr.mxu0 0.0
        %505 = vmatpush1.msra.mxu0 0.0
        %506 = vmatprep.subr.mxu0 0.0
        %507 = vmatpush1.msra.mxu0 0.0
        %508 = vmatprep.subr.mxu0 0.0
        %509 = vmatpush1.msra.mxu0 0.0
        %510 = vmatprep.subr.mxu0 0.0
        %511 = vmatpush1.msra.mxu0 0.0
        %512 = vmatprep.subr.mxu0 0.0
        %513 = vmatpush1.msra.mxu0 0.0
        %514 = vmatprep.subr.mxu0 0.0
        %515 = vmatpush1.msra.mxu0 0.0
        %516 = vmatprep.subr.mxu0 0.0
        %517 = vmatpush1.msra.mxu0 0.0
        %518 = vmatprep.subr.mxu0 0.0
        %519 = vmatpush1.msra.mxu0 0.0
        %520 = vmatprep.subr.mxu0 0.0
        %521 = vmatpush1.msra.mxu0 0.0
        %522 = vmatprep.subr.mxu0 0.0
        %523 = vmatpush1.msra.mxu0 0.0
        %524 = vmatprep.subr.mxu0 0.0
        %525 = vmatpush1.msra.mxu0 0.0
        %526 = vmatprep.subr.mxu0 0.0
        %527 = vmatpush1.msra.mxu0 0.0
        %528 = vmatprep.subr.mxu0 0.0
        %529 = vmatpush1.msra.mxu0 0.0
        %530 = vmatprep.subr.mxu0 0.0
        %531 = vmatpush1.msra.mxu0 0.0
        %532 = vmatprep.subr.mxu0 0.0
        %533 = vmatpush1.msra.mxu0 0.0
        %534 = vmatprep.subr.mxu0 0.0
        %535 = vmatpush1.msra.mxu0 0.0
        %536 = vmatprep.subr.mxu0 0.0
        %537 = vmatpush1.msra.mxu0 0.0
        %538 = vmatprep.subr.mxu0 0.0
        %539 = vmatpush1.msra.mxu0 0.0
        %540 = vmatprep.subr.mxu0 0.0
        %541 = vmatpush1.msra.mxu0 0.0
        %542 = vmatprep.mubr.f32.mxu0 0.0
        %543 = vmatmul.mubr.f32.gmra.mrb[0].mxu0 %v401
        %v544 = vpop.f32.mrb[0].mxu0
        %v545 = vadd.f32 0.0, %v544
        %v546 = vpop.f32.mrb[0].mxu0
        %547 = vdwg.mxu0
        %548 = vst.msk [vmem:[%s369] sm:$0xff] %vm380, %v545
        %v549 = vld [vmem:[#allocation8] sm:$0xff]
        %v550 = vld [vmem:[#allocation8 + $0x8] sm:$0xff]
        %v551 = vld [vmem:[#allocation8 + $0x10] sm:$0xff]
        %v552 = vld [vmem:[#allocation8 + $0x18] sm:$0xff]
        %553 = vmatprep.subr.mxu0 0.0
        %554 = vmatpush1.msra.mxu0 %v549
        %555 = vmatprep.subr.mxu0 0.0
        %556 = vmatpush1.msra.mxu0 %v550
        %557 = vmatprep.subr.mxu0 0.0
        %558 = vmatpush1.msra.mxu0 %v551
        %559 = vmatprep.subr.mxu0 0.0
        %560 = vmatpush1.msra.mxu0 %v552
        %561 = vmatprep.subr.mxu0 0.0
        %562 = vmatpush1.msra.mxu0 0.0
        %563 = vmatprep.subr.mxu0 0.0
        %564 = vmatpush1.msra.mxu0 0.0
        %565 = vmatprep.subr.mxu0 0.0
        %566 = vmatpush1.msra.mxu0 0.0
        %567 = vmatprep.subr.mxu0 0.0
        %568 = vmatpush1.msra.mxu0 0.0
        %569 = vmatprep.subr.mxu0 0.0
        %570 = vmatpush1.msra.mxu0 0.0
        %571 = vmatprep.subr.mxu0 0.0
        %572 = vmatpush1.msra.mxu0 0.0
        %573 = vmatprep.subr.mxu0 0.0
        %574 = vmatpush1.msra.mxu0 0.0
        %575 = vmatprep.subr.mxu0 0.0
        %576 = vmatpush1.msra.mxu0 0.0
        %577 = vmatprep.subr.mxu0 0.0
        %578 = vmatpush1.msra.mxu0 0.0
        %579 = vmatprep.subr.mxu0 0.0
        %580 = vmatpush1.msra.mxu0 0.0
        %581 = vmatprep.subr.mxu0 0.0
        %582 = vmatpush1.msra.mxu0 0.0
        %583 = vmatprep.subr.mxu0 0.0
        %584 = vmatpush1.msra.mxu0 0.0
        %585 = vmatprep.subr.mxu0 0.0
        %586 = vmatpush1.msra.mxu0 0.0
        %587 = vmatprep.subr.mxu0 0.0
        %588 = vmatpush1.msra.mxu0 0.0
        %589 = vmatprep.subr.mxu0 0.0
        %590 = vmatpush1.msra.mxu0 0.0
        %591 = vmatprep.subr.mxu0 0.0
        %592 = vmatpush1.msra.mxu0 0.0
        %593 = vmatprep.subr.mxu0 0.0
        %594 = vmatpush1.msra.mxu0 0.0
        %595 = vmatprep.subr.mxu0 0.0
        %596 = vmatpush1.msra.mxu0 0.0
        %597 = vmatprep.subr.mxu0 0.0
        %598 = vmatpush1.msra.mxu0 0.0
        %599 = vmatprep.subr.mxu0 0.0
        %600 = vmatpush1.msra.mxu0 0.0
        %601 = vmatprep.subr.mxu0 0.0
        %602 = vmatpush1.msra.mxu0 0.0
        %603 = vmatprep.subr.mxu0 0.0
        %604 = vmatpush1.msra.mxu0 0.0
        %605 = vmatprep.subr.mxu0 0.0
        %606 = vmatpush1.msra.mxu0 0.0
        %607 = vmatprep.subr.mxu0 0.0
        %608 = vmatpush1.msra.mxu0 0.0
        %609 = vmatprep.subr.mxu0 0.0
        %610 = vmatpush1.msra.mxu0 0.0
        %611 = vmatprep.subr.mxu0 0.0
        %612 = vmatpush1.msra.mxu0 0.0
        %613 = vmatprep.subr.mxu0 0.0
        %614 = vmatpush1.msra.mxu0 0.0
        %615 = vmatprep.subr.mxu0 0.0
        %616 = vmatpush1.msra.mxu0 0.0
        %617 = vmatprep.mubr.f32.mxu0 0.0
        %618 = vmatmul.mubr.f32.gmra.mrb[0].mxu0 %v401
        %v619 = vpop.f32.mrb[0].mxu0
        %v620 = vadd.f32 0.0, %v619
        %v621 = vpop.f32.mrb[0].mxu0
        %622 = vdwg.mxu0
        %623 = vst.msk [vmem:[%s376] sm:$0xff] %vm380, %v620
        %s624 = sand.u32 %s164, 1
        %s625 = scalar_lea.sflag [#allocation4], %s624
        %s626 = sand.u32 %s164, 1
        %s627 = smul.addr %s626, 8
        %s628 = scalar_lea.vmem [#allocation10], %s627
        %s629 = sand.u32 %s30, 1
        %s630 = scalar_lea.sflag [#allocation12], %s629
        %s631 = sand.u32 %s192, 1
        %s632 = smul.addr %s631, 8
        %s633 = scalar_lea.vmem [#allocation11], %s632
        %s634 = sand.u32 %s30, 1
        %s635 = scalar_lea.sflag [#allocation12], %s634
        %s636 = sand.u32 %s220, 1
        %s637 = smul.addr %s636, 8
        %s638 = scalar_lea.vmem [#allocation13], %s637
        // Predicated region
        $region57: #{tpu_custom_call.1} parent=39 // pred_check
          %p639 = pneg %p174
        $region58: #{tpu_custom_call.1} parent=39 // pred_check_branch
          %641 = sbr.rel (%p639) target = $region60
        $region59: #{tpu_custom_call.1} parent=39 // pred_region
          %s643 = ssub.s32 128, 128
          %644 = vsyncadd %s625, %s643
          %s645 = sadd.s32 %s35, %s34
          %s646 = smul.addr %s645, 128
          %s647 = scalar_lea.hbm %s5, %s646
          %s649 = sshll.u32 %s628, 4
          %s650 = int_to_ptr.vmem [resolvable:$true] %s649
          %652 = dma.vmem_to_hbm [thread:$0]  %s650, 128, %s647, %s625
        $region60: #{tpu_custom_call.1} parent=39 // pred_fallthru
          _
        // Predicated region
        $region61: #{tpu_custom_call.1} parent=39 // pred_check
          %p653 = pneg %p202
        $region62: #{tpu_custom_call.1} parent=39 // pred_check_branch
          %655 = sbr.rel (%p653) target = $region64
        $region63: #{tpu_custom_call.1} parent=39 // pred_region
          %s657 = ssub.s32 128, 128
          %658 = vsyncadd %s630, %s657
          %s659 = sadd.s32 %s35, %s34
          %s660 = smul.addr %s659, 128
          %s661 = scalar_lea.hbm %s6, %s660
          %s663 = sshll.u32 %s633, 4
          %s664 = int_to_ptr.vmem [resolvable:$true] %s663
          %666 = dma.vmem_to_hbm [thread:$0]  %s664, 128, %s661, %s630
        $region64: #{tpu_custom_call.1} parent=39 // pred_fallthru
          _
        // Predicated region
        $region65: #{tpu_custom_call.1} parent=39 // pred_check
          %p667 = pneg %p230
        $region66: #{tpu_custom_call.1} parent=39 // pred_check_branch
          %669 = sbr.rel (%p667) target = $region68
        $region67: #{tpu_custom_call.1} parent=39 // pred_region
          %s671 = ssub.s32 128, 128
          %672 = vsyncadd %s635, %s671
          %s673 = sadd.s32 %s35, %s34
          %s674 = smul.addr %s673, 128
          %s675 = scalar_lea.hbm %s7, %s674
          %s677 = sshll.u32 %s638, 4
          %s678 = int_to_ptr.vmem [resolvable:$true] %s677
          %680 = dma.vmem_to_hbm [thread:$0]  %s678, 128, %s675, %s635
        $region68: #{tpu_custom_call.1} parent=39 // pred_fallthru
          _
      $region40: #{tpu_custom_call.1} parent=5 // pred_fallthru
        _
      %p681 = scmp.le.s32.totalorder 2, %s25
      // Predicated region
      $region69: #{tpu_custom_call.1} parent=5 // pred_check
        %p682 = pneg %p681
      $region70: #{tpu_custom_call.1} parent=5 // pred_check_branch
        %684 = sbr.rel (%p682) target = $region72
      $region71: #{tpu_custom_call.1} parent=5 // pred_region
        %s685 = ssub.s32 %s25, 2
        // Predicated region
        $region73: #{tpu_custom_call.1} parent=71 // pred_check
          %p686 = pneg %p180
        $region74: #{tpu_custom_call.1} parent=71 // pred_check_branch
          %688 = sbr.rel (%p686) target = $region76
        $region75: #{tpu_custom_call.1} parent=71 // pred_region
          %s689 = sand.u32 %s165, 1
          %s690 = scalar_lea.sflag [#allocation4], %s689
          %s691 = sand.u32 %s165, 1
          %s692 = smul.addr %s691, 8
          %s693 = scalar_lea.vmem [#allocation10], %s692
          %694 = dma.done %s690, 128
        $region76: #{tpu_custom_call.1} parent=71 // pred_fallthru
          _
        // Predicated region
        $region77: #{tpu_custom_call.1} parent=71 // pred_check
          %p695 = pneg %p208
        $region78: #{tpu_custom_call.1} parent=71 // pred_check_branch
          %697 = sbr.rel (%p695) target = $region80
        $region79: #{tpu_custom_call.1} parent=71 // pred_region
          %s698 = sand.u32 %s31, 1
          %s699 = scalar_lea.sflag [#allocation12], %s698
          %s700 = sand.u32 %s193, 1
          %s701 = smul.addr %s700, 8
          %s702 = scalar_lea.vmem [#allocation11], %s701
          %703 = dma.done %s699, 128
        $region80: #{tpu_custom_call.1} parent=71 // pred_fallthru
          _
        // Predicated region
        $region81: #{tpu_custom_call.1} parent=71 // pred_check
          %p704 = pneg %p236
        $region82: #{tpu_custom_call.1} parent=71 // pred_check_branch
          %706 = sbr.rel (%p704) target = $region84
        $region83: #{tpu_custom_call.1} parent=71 // pred_region
          %s707 = sand.u32 %s31, 1
          %s708 = scalar_lea.sflag [#allocation12], %s707
          %s709 = sand.u32 %s221, 1
          %s710 = smul.addr %s709, 8
          %s711 = scalar_lea.vmem [#allocation13], %s710
          %712 = dma.done %s708, 128
        $region84: #{tpu_custom_call.1} parent=71 // pred_fallthru
          _
      $region72: #{tpu_custom_call.1} parent=5 // pred_fallthru
        _
    $region6: #{tpu_custom_call.1} parent=1 // loop_footer
      %s29 = sadd.s32 1, %s25
    $region7: #{tpu_custom_call.1} parent=1 // loop_footer_branch
      %24 = sbr.rel target = $region3
    $region8: #{tpu_custom_call.1} parent=1 // loop_exit
      _
    %713 = vsyncpa [#allocation3], 1
    %s714 = scalar_lea.sflag [#allocation3], 1
    %715 = vsyncpa %s714, 1
    %716 = vsyncpa [#allocation6], 1
    %717 = vsyncpa [#allocation9], 1
    %718 = vsyncpa [#allocation4], 1
    %s719 = scalar_lea.sflag [#allocation4], 1
    %720 = vsyncpa %s719, 1
    %721 = vsyncpa [#allocation12], 1
    %s722 = scalar_lea.sflag [#allocation12], 1
    %723 = vsyncpa %s722, 1

</llo_original>
